<compile_context>
chip_gen: v6e
topology: v6e:2x2x1
jax: 0.10.0
libtpu: 0.0.40
codegen_flags: <defaults>
</compile_context>

<pallas_src>
from functools import partial

import jax
import jax.numpy as jnp
from jax import lax
from jax.experimental import pallas as pl
from jax.experimental.pallas import tpu as pltpu

LANE = 128  # TPU lane width


def _cdiv(a, b):
    return -(-a // b)


def _round_up(n, m):
    return _cdiv(n, m) * m


def _mlp_kernel(x_ref, w1_ref, w2t_ref, bw_ref, b3_ref, o_ref):
    # x_ref  : (TB, D)  f32  — one batch tile, batch-major, straight from HBM
    # w1_ref : (Hp, D)  f32  — w1^T, zero-padded hidden dim
    # w2t_ref: (Hp, Hp) bf16 — w2^T
    # bw_ref : (Hp, 3)  f32  — columns [b1 | b2 | w3]
    # b3_ref : (1,)     f32  — scalar bias in SMEM
    x = x_ref[...]

    # fc1 + ReLU: contract x's D axis against w1^T directly (no transpose materialized).
    # K = 10, so doing this matmul in f32 costs nothing and keeps full input precision.
    h1 = lax.dot_general(
        w1_ref[...], x,
        dimension_numbers=(((1,), (1,)), ((), ())),
        preferred_element_type=jnp.float32,
    )                                                             # (Hp, TB)
    h1 = jnp.maximum(h1 + bw_ref[:, 0:1], 0.0)

    # fc2 + ReLU: bf16 MXU matmul with f32 accumulation (the dominant matmul).
    h2 = jnp.dot(w2t_ref[...], h1.astype(jnp.bfloat16),
                 preferred_element_type=jnp.float32)              # (Hp, TB)
    h2 = jnp.maximum(h2 + bw_ref[:, 1:2], 0.0)

    # fc3 (output width 1): VPU multiply + sublane (XLU) reduction over the hidden dim.
    out = jnp.sum(h2 * bw_ref[:, 2:3], axis=0, keepdims=True) + b3_ref[0]   # (1, TB)

    # Lane-dense store: batch runs along the 128-lane axis.
    o_ref[...] = out.astype(o_ref.dtype)


def pack_params(params):
    """One-time packing of parameters into the kernel layout (call once at init).

    params: dict with w1 (D,H), b1 (1,H), w2 (H,H), b2 (1,H), w3 (H,1), b3 (1,1),
            stored as (in_features, out_features), i.e. transpose of torch layout.
    """
    w1, b1 = params["w1"], params["b1"]
    w2, b2 = params["w2"], params["b2"]
    w3, b3 = params["w3"], params["b3"]
    D, H = w1.shape
    Hp = _round_up(H, LANE)  # pad hidden dim to a full lane width; zeros are exact through ReLU

    w1t = jnp.zeros((Hp, D), jnp.float32).at[:H, :].set(w1.T.astype(jnp.float32))
    w2t = jnp.zeros((Hp, Hp), jnp.float32).at[:H, :H].set(
        w2.T.astype(jnp.float32)).astype(jnp.bfloat16)

    bw = jnp.zeros((Hp, 3), jnp.float32)                 # merged [b1 | b2 | w3]
    bw = bw.at[:H, 0].set(b1.reshape(-1).astype(jnp.float32))
    bw = bw.at[:H, 1].set(b2.reshape(-1).astype(jnp.float32))
    bw = bw.at[:H, 2].set(w3.reshape(-1).astype(jnp.float32))

    return {
        "w1t": w1t,
        "w2t": w2t,
        "bw": bw,
        "b3": b3.reshape((1,)).astype(jnp.float32),
    }


@partial(jax.jit, static_argnames=("max_batch_tile", "core_count"))
def static_regressor_forward(x, packed, *, max_batch_tile=4096, core_count=1):
    """Fused forward pass of StaticRegressorNet.

    x:      (B, input_dim) float32
    packed: output of pack_params (pre-packed once; not per call)
    max_batch_tile: batch tile size target (~4096 on v5e, up to ~8192 on v6e/v7x)
    core_count:     set to 2 on v7x so the grid has an even number of steps
    returns (B, 1) float32
    """
    w1t, w2t, bw, b3 = packed["w1t"], packed["w2t"], packed["bw"], packed["b3"]
    B, D = x.shape
    Hp = w1t.shape[0]
    assert w1t.shape[1] == D, (w1t.shape, D)

    # ---- batch tiling -------------------------------------------------------
    # Pad batch only to the 128-lane granule, then choose the tile count so tiles
    # divide the padded batch (minimal wasted samples even with a large TB).
    B128 = _round_up(B, LANE)
    nt = max(_cdiv(B128, max_batch_tile), 1)
    if core_count > 1 and B128 >= core_count * LANE:
        nt = _round_up(nt, core_count)          # even step count -> both v7x TCs busy
    TB = _round_up(_cdiv(B128, nt), LANE)
    B_pad = nt * TB

    x = x.astype(jnp.float32)
    if B_pad != B:                               # only copies when B is unaligned
        x = jnp.pad(x, ((0, B_pad - B), (0, 0)))

    out_row = pl.pallas_call(
        _mlp_kernel,
        out_shape=jax.ShapeDtypeStruct((1, B_pad), jnp.float32),
        grid=(nt,),
        in_specs=[
            pl.BlockSpec((TB, D), lambda i: (i, 0)),    # x tiles pipelined over batch (f32, no wrapper transpose)
            pl.BlockSpec((Hp, D), lambda i: (0, 0)),    # weights/biases stay VMEM-resident
            pl.BlockSpec((Hp, Hp), lambda i: (0, 0)),
            pl.BlockSpec((Hp, 3), lambda i: (0, 0)),
            pl.BlockSpec(memory_space=pltpu.MemorySpace.SMEM),  # b3 scalar via SMEM
        ],
        out_specs=pl.BlockSpec((1, TB), lambda i: (0, i)),      # lane-dense output slab
        compiler_params=pltpu.CompilerParams(
            dimension_semantics=("parallel",),                   # shard batch tiles over TCs
            vmem_limit_bytes=32 * 1024 * 1024,
        ),
    )(x, w1t, w2t, bw, b3)

    return out_row[0, :B].reshape(B, 1)


def init_params(input_dim=10, hidden_dim=64, seed=0):
    """Deterministic synthetic parameters matching the torch module's shapes."""
    keys = jax.random.split(jax.random.PRNGKey(seed), 6)
    s1 = 1.0 / jnp.sqrt(input_dim)
    s2 = 1.0 / jnp.sqrt(hidden_dim)
    return {
        # stored as (in_features, out_features) — transpose of torch layout
        "w1": jax.random.uniform(keys[0], (input_dim, hidden_dim), jnp.float32, -s1, s1),
        "b1": jax.random.uniform(keys[1], (1, hidden_dim), jnp.float32, -s1, s1),
        "w2": jax.random.uniform(keys[2], (hidden_dim, hidden_dim), jnp.float32, -s2, s2),
        "b2": jax.random.uniform(keys[3], (1, hidden_dim), jnp.float32, -s2, s2),
        "w3": jax.random.uniform(keys[4], (hidden_dim, 1), jnp.float32, -s2, s2),
        "b3": jax.random.uniform(keys[5], (1, 1), jnp.float32, -s2, s2),
    }


def reference_forward(x, p):
    h1 = jnp.maximum(x @ p["w1"] + p["b1"], 0.0)
    h2 = jnp.maximum(h1 @ p["w2"] + p["b2"], 0.0)
    return h2 @ p["w3"] + p["b3"]


if __name__ == "__main__":
    input_dim, hidden_dim, batch = 10, 64, 8

    key = jax.random.PRNGKey(0)
    kx, kx2 = jax.random.split(key)
    params = init_params(input_dim, hidden_dim, seed=0)
    packed = pack_params(params)                 # packed ONCE, reused across calls

    # --- small single-tile check --------------------------------------------
    x = jax.random.normal(kx, (batch, input_dim), jnp.float32)
    out = static_regressor_forward(x, packed)
    out = jax.block_until_ready(out)
    ref = reference_forward(x, params)
    assert out.shape == (batch, 1), out.shape
    assert jnp.allclose(out, ref, atol=2e-2, rtol=2e-2), "mismatch vs pure-JAX reference"

    # --- multi-tile / ragged-batch / even-step (v7x-style) path --------------
    x2 = jax.random.normal(kx2, (300, input_dim), jnp.float32)
    out2 = static_regressor_forward(x2, packed, max_batch_tile=128, core_count=2)
    out2 = jax.block_until_ready(out2)
    ref2 = reference_forward(x2, params)
    assert out2.shape == (300, 1), out2.shape
    assert jnp.allclose(out2, ref2, atol=2e-2, rtol=2e-2), "mismatch (multi-tile path)"

    print("KERNEL_OK")
</pallas_src>

<mosaic_0001>
module attributes {stable_mosaic.version = 11 : i64} {
  func.func @_mlp_kernel(%arg0: i32, %arg1: memref<128x10xf32, #tpu.memory_space<vmem>>, %arg2: memref<128x10xf32, #tpu.memory_space<vmem>>, %arg3: memref<128x128xbf16, #tpu.memory_space<vmem>>, %arg4: memref<128x3xf32, #tpu.memory_space<vmem>>, %arg5: memref<1xf32, #tpu.memory_space<smem>>, %arg6: memref<1x128xf32, #tpu.memory_space<vmem>>) attributes {dimension_semantics = [#tpu.dimension_semantics<parallel>], iteration_bounds = array<i64: 1>, scalar_prefetch = 0 : i64, scratch_operands = 0 : i64, tpu.core_type = #tpu.core_type<tc>, window_params = [{transform_indices = @transform_0, window_bounds = array<i64: 128, 10>}, {pipeline_mode = #tpu.pipeline_mode<synchronous>, transform_indices = @transform_1, window_bounds = array<i64: 128, 10>}, {pipeline_mode = #tpu.pipeline_mode<synchronous>, transform_indices = @transform_2, window_bounds = array<i64: 128, 128>}, {pipeline_mode = #tpu.pipeline_mode<synchronous>, transform_indices = @transform_3, window_bounds = array<i64: 128, 3>}, {transform_indices = @transform_4, window_bounds = array<i64: 1>}, {transform_indices = @transform_5, window_bounds = array<i64: 1, 128>}]} {
    %c0 = arith.constant 0 : index
    %c0_0 = arith.constant 0 : index
    %0 = vector.load %arg1[%c0, %c0_0] : memref<128x10xf32, #tpu.memory_space<vmem>>, vector<128x10xf32>
    %c0_1 = arith.constant 0 : index
    %c0_2 = arith.constant 0 : index
    %1 = vector.load %arg2[%c0_1, %c0_2] : memref<128x10xf32, #tpu.memory_space<vmem>>, vector<128x10xf32>
    %cst = arith.constant dense<0.000000e+00> : vector<128x128xf32>
    %2 = tpu.matmul %1, %0, %cst {dimension_numbers = #tpu.dot_dimension_numbers<[1], [1], [0], [0], [0, 0, 1, 0], [], []>} : vector<128x10xf32>, vector<128x10xf32>, vector<128x128xf32> -> vector<128x128xf32>
    %c0_3 = arith.constant 0 : index
    %c0_4 = arith.constant 0 : index
    %3 = vector.load %arg4[%c0_3, %c0_4] : memref<128x3xf32, #tpu.memory_space<vmem>>, vector<128x1xf32>
    %4 = vector.broadcast %3 : vector<128x1xf32> to vector<128x128xf32>
    %5 = arith.addf %2, %4 : vector<128x128xf32>
    %cst_5 = arith.constant 0.000000e+00 : f32
    %6 = vector.broadcast %cst_5 : f32 to vector<128x128xf32>
    %7 = arith.maximumf %5, %6 : vector<128x128xf32>
    %c0_6 = arith.constant 0 : index
    %c0_7 = arith.constant 0 : index
    %8 = vector.load %arg3[%c0_6, %c0_7] : memref<128x128xbf16, #tpu.memory_space<vmem>>, vector<128x128xbf16>
    %9 = arith.truncf %7 : vector<128x128xf32> to vector<128x128xbf16>
    %cst_8 = arith.constant dense<0.000000e+00> : vector<128x128xf32>
    %10 = tpu.matmul %8, %9, %cst_8 {dimension_numbers = #tpu.dot_dimension_numbers<[1], [0], [0], [1], [0, 0, 1, 1], [], []>} : vector<128x128xbf16>, vector<128x128xbf16>, vector<128x128xf32> -> vector<128x128xf32>
    %c0_9 = arith.constant 0 : index
    %c1 = arith.constant 1 : index
    %11 = vector.load %arg4[%c0_9, %c1] : memref<128x3xf32, #tpu.memory_space<vmem>>, vector<128x1xf32>
    %12 = vector.broadcast %11 : vector<128x1xf32> to vector<128x128xf32>
    %13 = arith.addf %10, %12 : vector<128x128xf32>
    %cst_10 = arith.constant 0.000000e+00 : f32
    %14 = vector.broadcast %cst_10 : f32 to vector<128x128xf32>
    %15 = arith.maximumf %13, %14 : vector<128x128xf32>
    %c0_11 = arith.constant 0 : index
    %c2 = arith.constant 2 : index
    %16 = vector.load %arg4[%c0_11, %c2] : memref<128x3xf32, #tpu.memory_space<vmem>>, vector<128x1xf32>
    %17 = vector.broadcast %16 : vector<128x1xf32> to vector<128x128xf32>
    %18 = arith.mulf %15, %17 : vector<128x128xf32>
    %cst_12 = arith.constant dense<0.000000e+00> : vector<128xf32>
    %19 = vector.multi_reduction <add>, %18, %cst_12 [0] : vector<128x128xf32> to vector<128xf32>
    %20 = vector.shape_cast %19 : vector<128xf32> to vector<1x128xf32>
    %c0_13 = arith.constant 0 : index
    %21 = memref.load %arg5[%c0_13] : memref<1xf32, #tpu.memory_space<smem>>
    %22 = vector.broadcast %21 : f32 to vector<1x128xf32>
    %23 = arith.addf %20, %22 : vector<1x128xf32>
    %c0_14 = arith.constant 0 : index
    %c0_15 = arith.constant 0 : index
    %24 = vector.load %arg6[%c0_14, %c0_15] : memref<1x128xf32, #tpu.memory_space<vmem>>, vector<1x128xf32>
    tpu.vector_store %arg6[%c0_14, %c0_15], %23 {strides = array<i32>} : memref<1x128xf32, #tpu.memory_space<vmem>>, vector<1x128xf32>,
    return
  }
  func.func @transform_0(%arg0: i32) -> (i32, i32) {
    %c0_i32 = arith.constant 0 : i32
    %c0_i32_0 = arith.constant 0 : i32
    return %arg0, %c0_i32 : i32, i32
  }
  func.func @transform_1(%arg0: i32) -> (i32, i32) {
    %c0_i32 = arith.constant 0 : i32
    %c0_i32_0 = arith.constant 0 : i32
    %c0_i32_1 = arith.constant 0 : i32
    return %c0_i32, %c0_i32_0 : i32, i32
  }
  func.func @transform_2(%arg0: i32) -> (i32, i32) {
    %c0_i32 = arith.constant 0 : i32
    %c0_i32_0 = arith.constant 0 : i32
    %c0_i32_1 = arith.constant 0 : i32
    return %c0_i32, %c0_i32_0 : i32, i32
  }
  func.func @transform_3(%arg0: i32) -> (i32, i32) {
    %c0_i32 = arith.constant 0 : i32
    %c0_i32_0 = arith.constant 0 : i32
    %c0_i32_1 = arith.constant 0 : i32
    return %c0_i32, %c0_i32_0 : i32, i32
  }
  func.func @transform_4(%arg0: i32) -> i32 {
    %c0_i32 = arith.constant 0 : i32
    %c0_i32_0 = arith.constant 0 : i32
    return %c0_i32 : i32
  }
  func.func @transform_5(%arg0: i32) -> (i32, i32) {
    %c0_i32 = arith.constant 0 : i32
    %c0_i32_0 = arith.constant 0 : i32
    return %c0_i32, %arg0 : i32, i32
  }
}

</mosaic_0001>

<llo_original>
// kernel: static_regressor_forward.1
$region0: #{static_regressor_forward.1}
  #allocation0 [shape = 'u32[]', space=smem, size = 0x4, offset = 0x4, fixed_abs, tag = 'smem constant byte address 0x4 - core index']
  #allocation1 [shape = 'u32[144,128]{1,0:T(1,128)}', space=vmem, size = 0x12000, scoped, tag = 'internal scratch']
  #allocation2 [shape = 'f32[1]{0:T(128)S(6)}', space=smem, size = 0x200, scoped, tag = 'scoped memory for static_regressor_forward.1']
  %s0 = inlined_call_operand.vmem [shape: f32[128,10], index: 0, kind: input, shape index: {}]
  %s1 = inlined_call_operand.vmem [shape: f32[128,10], index: 1, kind: input, shape index: {}]
  %s2 = inlined_call_operand.vmem [shape: bf16[128,128], index: 2, kind: input, shape index: {}]
  %s3 = inlined_call_operand.vmem [shape: f32[128,3], index: 3, kind: input, shape index: {}]
  %s4 = inlined_call_operand.<no memory space> [shape: f32[1], index: 4, kind: input, shape index: {}]
  %s5 = inlined_call_operand.vmem [shape: f32[1,128], index: 5, kind: output, shape index: {}]
  %s6 = sld [smem:[#allocation0]]
  $region30: #{static_regressor_forward.1} parent=0
    _
  %s8 = ssub.s32 1, %s6
  %s9 = scalar_select 0, %s8, %s6
  %10 = sst [smem:[#allocation2]] %s4
  // Predicated region
  $region2: #{static_regressor_forward.1} parent=0 // pred_check
    _
  $region3: #{static_regressor_forward.1} parent=0 // pred_check_branch
    %12 = sbr.rel (0) target = $region5
  $region4: #{static_regressor_forward.1} parent=0 // pred_region
    _
  $region5: #{static_regressor_forward.1} parent=0 // pred_fallthru
    _
  // Predicated region
  $region6: #{static_regressor_forward.1} parent=0 // pred_check
    _
  $region7: #{static_regressor_forward.1} parent=0 // pred_check_branch
    %14 = sbr.rel (0) target = $region9
  $region8: #{static_regressor_forward.1} parent=0 // pred_region
    _
  $region9: #{static_regressor_forward.1} parent=0 // pred_fallthru
    _
  // Predicated region
  $region10: #{static_regressor_forward.1} parent=0 // pred_check
    _
  $region11: #{static_regressor_forward.1} parent=0 // pred_check_branch
    %16 = sbr.rel (0) target = $region13
  $region12: #{static_regressor_forward.1} parent=0 // pred_region
    _
  $region13: #{static_regressor_forward.1} parent=0 // pred_fallthru
    _
  // Predicated region
  $region14: #{static_regressor_forward.1} parent=0 // pred_check
    _
  $region15: #{static_regressor_forward.1} parent=0 // pred_check_branch
    %18 = sbr.rel (0) target = $region17
  $region16: #{static_regressor_forward.1} parent=0 // pred_region
    _
  $region17: #{static_regressor_forward.1} parent=0 // pred_fallthru
    _
  // Predicated region
  $region18: #{static_regressor_forward.1} parent=0 // pred_check
    _
  $region19: #{static_regressor_forward.1} parent=0 // pred_check_branch
    %20 = sbr.rel (0) target = $region21
  $region20: #{static_regressor_forward.1} parent=0 // pred_region
    _
  $region21: #{static_regressor_forward.1} parent=0 // pred_fallthru
    _
  %v22 = vld [vmem:[%s0] sm:$0xff]
  %v23 = vld [vmem:[%s0 + $0x8] sm:$0xff]
  %v24 = vld [vmem:[%s0 + $0x10] sm:$0xff]
  %v25 = vld [vmem:[%s0 + $0x18] sm:$0xff]
  %v26 = vld [vmem:[%s0 + $0x20] sm:$0xff]
  %v27 = vld [vmem:[%s0 + $0x28] sm:$0xff]
  %v28 = vld [vmem:[%s0 + $0x30] sm:$0xff]
  %v29 = vld [vmem:[%s0 + $0x38] sm:$0xff]
  %v30 = vld [vmem:[%s0 + $0x40] sm:$0xff]
  %v31 = vld [vmem:[%s0 + $0x48] sm:$0xff]
  %v32 = vld [vmem:[%s0 + $0x50] sm:$0xff]
  %v33 = vld [vmem:[%s0 + $0x58] sm:$0xff]
  %v34 = vld [vmem:[%s0 + $0x60] sm:$0xff]
  %v35 = vld [vmem:[%s0 + $0x68] sm:$0xff]
  %v36 = vld [vmem:[%s0 + $0x70] sm:$0xff]
  %v37 = vld [vmem:[%s0 + $0x78] sm:$0xff]
  %v38 = vld [vmem:[%s1] sm:$0xff]
  %v39 = vld [vmem:[%s1 + $0x8] sm:$0xff]
  %v40 = vld [vmem:[%s1 + $0x10] sm:$0xff]
  %v41 = vld [vmem:[%s1 + $0x18] sm:$0xff]
  %v42 = vld [vmem:[%s1 + $0x20] sm:$0xff]
  %v43 = vld [vmem:[%s1 + $0x28] sm:$0xff]
  %v44 = vld [vmem:[%s1 + $0x30] sm:$0xff]
  %v45 = vld [vmem:[%s1 + $0x38] sm:$0xff]
  %v46 = vld [vmem:[%s1 + $0x40] sm:$0xff]
  %v47 = vld [vmem:[%s1 + $0x48] sm:$0xff]
  %v48 = vld [vmem:[%s1 + $0x50] sm:$0xff]
  %v49 = vld [vmem:[%s1 + $0x58] sm:$0xff]
  %v50 = vld [vmem:[%s1 + $0x60] sm:$0xff]
  %v51 = vld [vmem:[%s1 + $0x68] sm:$0xff]
  %v52 = vld [vmem:[%s1 + $0x70] sm:$0xff]
  %v53 = vld [vmem:[%s1 + $0x78] sm:$0xff]
  %v54 = vld [vmem:[%s3] sm:$0xff]
  %v55 = vld [vmem:[%s3 + $0x8] sm:$0xff]
  %v56 = vld [vmem:[%s3 + $0x10] sm:$0xff]
  %v57 = vld [vmem:[%s3 + $0x18] sm:$0xff]
  %v58 = vld [vmem:[%s3 + $0x20] sm:$0xff]
  %v59 = vld [vmem:[%s3 + $0x28] sm:$0xff]
  %v60 = vld [vmem:[%s3 + $0x30] sm:$0xff]
  %v61 = vld [vmem:[%s3 + $0x38] sm:$0xff]
  %v62 = vld [vmem:[%s3 + $0x40] sm:$0xff]
  %v63 = vld [vmem:[%s3 + $0x48] sm:$0xff]
  %v64 = vld [vmem:[%s3 + $0x50] sm:$0xff]
  %v65 = vld [vmem:[%s3 + $0x58] sm:$0xff]
  %v66 = vld [vmem:[%s3 + $0x60] sm:$0xff]
  %v67 = vld [vmem:[%s3 + $0x68] sm:$0xff]
  %v68 = vld [vmem:[%s3 + $0x70] sm:$0xff]
  %v69 = vld [vmem:[%s3 + $0x78] sm:$0xff]
  %71 = vset.pattern.permute.xlu0 0
  %72 = vperm.xlu0 %71, %v54
  %v73 = vpop.permute.xlu0 %72
  %76 = vset.pattern.permute.xlu0 0
  %77 = vperm.xlu0 %76, %v55
  %v78 = vpop.permute.xlu0 %77
  %81 = vset.pattern.permute.xlu0 0
  %82 = vperm.xlu0 %81, %v56
  %v83 = vpop.permute.xlu0 %82
  %86 = vset.pattern.permute.xlu0 0
  %87 = vperm.xlu0 %86, %v57
  %v88 = vpop.permute.xlu0 %87
  %91 = vset.pattern.permute.xlu0 0
  %92 = vperm.xlu0 %91, %v58
  %v93 = vpop.permute.xlu0 %92
  %96 = vset.pattern.permute.xlu0 0
  %97 = vperm.xlu0 %96, %v59
  %v98 = vpop.permute.xlu0 %97
  %101 = vset.pattern.permute.xlu0 0
  %102 = vperm.xlu0 %101, %v60
  %v103 = vpop.permute.xlu0 %102
  %106 = vset.pattern.permute.xlu0 0
  %107 = vperm.xlu0 %106, %v61
  %v108 = vpop.permute.xlu0 %107
  %111 = vset.pattern.permute.xlu0 0
  %112 = vperm.xlu0 %111, %v62
  %v113 = vpop.permute.xlu0 %112
  %116 = vset.pattern.permute.xlu0 0
  %117 = vperm.xlu0 %116, %v63
  %v118 = vpop.permute.xlu0 %117
  %121 = vset.pattern.permute.xlu0 0
  %122 = vperm.xlu0 %121, %v64
  %v123 = vpop.permute.xlu0 %122
  %126 = vset.pattern.permute.xlu0 0
  %127 = vperm.xlu0 %126, %v65
  %v128 = vpop.permute.xlu0 %127
  %131 = vset.pattern.permute.xlu0 0
  %132 = vperm.xlu0 %131, %v66
  %v133 = vpop.permute.xlu0 %132
  %136 = vset.pattern.permute.xlu0 0
  %137 = vperm.xlu0 %136, %v67
  %v138 = vpop.permute.xlu0 %137
  %141 = vset.pattern.permute.xlu0 0
  %142 = vperm.xlu0 %141, %v68
  %v143 = vpop.permute.xlu0 %142
  %146 = vset.pattern.permute.xlu0 0
  %147 = vperm.xlu0 %146, %v69
  %v148 = vpop.permute.xlu0 %147
  %vm150 = vcmask 80896
  %v152 = vsel %vm150, %v38, 0
  %v155 = vsel %vm150, %v39, 0
  %v158 = vsel %vm150, %v40, 0
  %v161 = vsel %vm150, %v41, 0
  %v164 = vsel %vm150, %v42, 0
  %v167 = vsel %vm150, %v43, 0
  %v170 = vsel %vm150, %v44, 0
  %v173 = vsel %vm150, %v45, 0
  %v176 = vsel %vm150, %v46, 0
  %v179 = vsel %vm150, %v47, 0
  %v182 = vsel %vm150, %v48, 0
  %v185 = vsel %vm150, %v49, 0
  %v188 = vsel %vm150, %v50, 0
  %v191 = vsel %vm150, %v51, 0
  %v194 = vsel %vm150, %v52, 0
  %v197 = vsel %vm150, %v53, 0
  %v200 = vsel %vm150, %v22, 0
  %v203 = vsel %vm150, %v23, 0
  %v206 = vsel %vm150, %v24, 0
  %v209 = vsel %vm150, %v25, 0
  %v212 = vsel %vm150, %v26, 0
  %v215 = vsel %vm150, %v27, 0
  %v218 = vsel %vm150, %v28, 0
  %v221 = vsel %vm150, %v29, 0
  %v224 = vsel %vm150, %v30, 0
  %v227 = vsel %vm150, %v31, 0
  %v230 = vsel %vm150, %v32, 0
  %v233 = vsel %vm150, %v33, 0
  %v236 = vsel %vm150, %v34, 0
  %v239 = vsel %vm150, %v35, 0
  %v242 = vsel %vm150, %v36, 0
  %v245 = vsel %vm150, %v37, 0
  %247 = vmatprep.subr.mxu0 0.0
  %248 = vmatpush1.xpose.msra.mxu0 %v245
  %249 = vmatprep.subr.mxu0 0.0
  %250 = vmatpush1.xpose.msra.mxu0 %v242
  %251 = vmatprep.subr.mxu0 0.0
  %252 = vmatpush1.xpose.msra.mxu0 %v239
  %253 = vmatprep.subr.mxu0 0.0
  %254 = vmatpush1.xpose.msra.mxu0 %v236
  %255 = vmatprep.subr.mxu0 0.0
  %256 = vmatpush1.xpose.msra.mxu0 %v233
  %257 = vmatprep.subr.mxu0 0.0
  %258 = vmatpush1.xpose.msra.mxu0 %v230
  %259 = vmatprep.subr.mxu0 0.0
  %260 = vmatpush1.xpose.msra.mxu0 %v227
  %261 = vmatprep.subr.mxu0 0.0
  %262 = vmatpush1.xpose.msra.mxu0 %v224
  %263 = vmatprep.subr.mxu0 0.0
  %264 = vmatpush1.xpose.msra.mxu0 %v221
  %265 = vmatprep.subr.mxu0 0.0
  %266 = vmatpush1.xpose.msra.mxu0 %v218
  %267 = vmatprep.subr.mxu0 0.0
  %268 = vmatpush1.xpose.msra.mxu0 %v215
  %269 = vmatprep.subr.mxu0 0.0
  %270 = vmatpush1.xpose.msra.mxu0 %v212
  %271 = vmatprep.subr.mxu0 0.0
  %272 = vmatpush1.xpose.msra.mxu0 %v209
  %273 = vmatprep.subr.mxu0 0.0
  %274 = vmatpush1.xpose.msra.mxu0 %v206
  %275 = vmatprep.subr.mxu0 0.0
  %276 = vmatpush1.xpose.msra.mxu0 %v203
  %277 = vmatprep.subr.mxu0 0.0
  %278 = vmatpush1.xpose.msra.mxu0 %v200
  %279 = vmatprep.subr.mxu0 0.0
  %280 = vmatpush2.xpose.msra.mxu0 0.0
  %281 = vmatprep.subr.mxu0 0.0
  %282 = vmatpush2.xpose.msra.mxu0 0.0
  %283 = vmatprep.subr.mxu0 0.0
  %284 = vmatpush2.xpose.msra.mxu0 0.0
  %285 = vmatprep.subr.mxu0 0.0
  %286 = vmatpush2.xpose.msra.mxu0 0.0
  %287 = vmatprep.subr.mxu0 0.0
  %288 = vmatpush2.xpose.msra.mxu0 0.0
  %289 = vmatprep.subr.mxu0 0.0
  %290 = vmatpush2.xpose.msra.mxu0 0.0
  %291 = vmatprep.subr.mxu0 0.0
  %292 = vmatpush2.xpose.msra.mxu0 0.0
  %293 = vmatprep.subr.mxu0 0.0
  %294 = vmatpush2.xpose.msra.mxu0 0.0
  %295 = vmatprep.subr.mxu0 0.0
  %296 = vmatpush2.xpose.msra.mxu0 0.0
  %297 = vmatprep.subr.mxu0 0.0
  %298 = vmatpush2.xpose.msra.mxu0 0.0
  %299 = vmatprep.subr.mxu0 0.0
  %300 = vmatpush2.xpose.msra.mxu0 0.0
  %301 = vmatprep.subr.mxu0 0.0
  %302 = vmatpush2.xpose.msra.mxu0 0.0
  %303 = vmatprep.subr.mxu0 0.0
  %304 = vmatpush2.xpose.msra.mxu0 0.0
  %305 = vmatprep.subr.mxu0 0.0
  %306 = vmatpush2.xpose.msra.mxu0 0.0
  %307 = vmatprep.subr.mxu0 0.0
  %308 = vmatpush2.xpose.msra.mxu0 0.0
  %309 = vmatprep.subr.mxu0 0.0
  %310 = vmatpush2.xpose.msra.mxu0 0.0
  %311 = vmatprep.mubr.f32.mxu0 0.0
  %312 = vmatmul.mubr.f32.gmra.mxu0 %v152
  %v313 = vpop.f32.mrf.mxu0
  %v314 = vadd.f32 %v73, %v313
  %v315 = vpop.f32.mrf.mxu0
  %316 = vmatprep.mubr.f32.mxu0 0.0
  %317 = vmatmul.mubr.f32.gmra.mxu0 %v155
  %v318 = vpop.f32.mrf.mxu0
  %v319 = vadd.f32 %v78, %v318
  %v320 = vpop.f32.mrf.mxu0
  %321 = vmatprep.mubr.f32.mxu0 0.0
  %322 = vmatmul.mubr.f32.gmra.mxu0 %v158
  %v323 = vpop.f32.mrf.mxu0
  %v324 = vadd.f32 %v83, %v323
  %v325 = vpop.f32.mrf.mxu0
  %326 = vmatprep.mubr.f32.mxu0 0.0
  %327 = vmatmul.mubr.f32.gmra.mxu0 %v161
  %v328 = vpop.f32.mrf.mxu0
  %v329 = vadd.f32 %v88, %v328
  %v330 = vpop.f32.mrf.mxu0
  %331 = vmatprep.mubr.f32.mxu0 0.0
  %332 = vmatmul.mubr.f32.gmra.mxu0 %v164
  %v333 = vpop.f32.mrf.mxu0
  %v334 = vadd.f32 %v93, %v333
  %v335 = vpop.f32.mrf.mxu0
  %336 = vmatprep.mubr.f32.mxu0 0.0
  %337 = vmatmul.mubr.f32.gmra.mxu0 %v167
  %v338 = vpop.f32.mrf.mxu0
  %v339 = vadd.f32 %v98, %v338
  %v340 = vpop.f32.mrf.mxu0
  %341 = vmatprep.mubr.f32.mxu0 0.0
  %342 = vmatmul.mubr.f32.gmra.mxu0 %v170
  %v343 = vpop.f32.mrf.mxu0
  %v344 = vadd.f32 %v103, %v343
  %v345 = vpop.f32.mrf.mxu0
  %346 = vmatprep.mubr.f32.mxu0 0.0
  %347 = vmatmul.mubr.f32.gmra.mxu0 %v173
  %v348 = vpop.f32.mrf.mxu0
  %v349 = vadd.f32 %v108, %v348
  %v350 = vpop.f32.mrf.mxu0
  %351 = vmatprep.mubr.f32.mxu0 0.0
  %352 = vmatmul.mubr.f32.gmra.mxu0 %v176
  %v353 = vpop.f32.mrf.mxu0
  %v354 = vadd.f32 %v113, %v353
  %v355 = vpop.f32.mrf.mxu0
  %356 = vmatprep.mubr.f32.mxu0 0.0
  %357 = vmatmul.mubr.f32.gmra.mxu0 %v179
  %v358 = vpop.f32.mrf.mxu0
  %v359 = vadd.f32 %v118, %v358
  %v360 = vpop.f32.mrf.mxu0
  %361 = vmatprep.mubr.f32.mxu0 0.0
  %362 = vmatmul.mubr.f32.gmra.mxu0 %v182
  %v363 = vpop.f32.mrf.mxu0
  %v364 = vadd.f32 %v123, %v363
  %v365 = vpop.f32.mrf.mxu0
  %366 = vmatprep.mubr.f32.mxu0 0.0
  %367 = vmatmul.mubr.f32.gmra.mxu0 %v185
  %v368 = vpop.f32.mrf.mxu0
  %v369 = vadd.f32 %v128, %v368
  %v370 = vpop.f32.mrf.mxu0
  %371 = vmatprep.mubr.f32.mxu0 0.0
  %372 = vmatmul.mubr.f32.gmra.mxu0 %v188
  %v373 = vpop.f32.mrf.mxu0
  %v374 = vadd.f32 %v133, %v373
  %v375 = vpop.f32.mrf.mxu0
  %376 = vmatprep.mubr.f32.mxu0 0.0
  %377 = vmatmul.mubr.f32.gmra.mxu0 %v191
  %v378 = vpop.f32.mrf.mxu0
  %v379 = vadd.f32 %v138, %v378
  %v380 = vpop.f32.mrf.mxu0
  %381 = vmatprep.mubr.f32.mxu0 0.0
  %382 = vmatmul.mubr.f32.gmra.mxu0 %v194
  %v383 = vpop.f32.mrf.mxu0
  %v384 = vadd.f32 %v143, %v383
  %v385 = vpop.f32.mrf.mxu0
  %386 = vmatprep.mubr.f32.mxu0 0.0
  %387 = vmatmul.mubr.f32.gmra.mxu0 %v197
  %v388 = vpop.f32.mrf.mxu0
  %v389 = vadd.f32 %v148, %v388
  %v390 = vpop.f32.mrf.mxu0
  %391 = vdwg.mxu0
  %v392 = vmax.f32 %v314, 0.0
  %v393 = vmax.f32 %v319, 0.0
  %v394 = vmax.f32 %v324, 0.0
  %v395 = vmax.f32 %v329, 0.0
  %v396 = vmax.f32 %v334, 0.0
  %v397 = vmax.f32 %v339, 0.0
  %v398 = vmax.f32 %v344, 0.0
  %v399 = vmax.f32 %v349, 0.0
  %v400 = vmax.f32 %v354, 0.0
  %v401 = vmax.f32 %v359, 0.0
  %v402 = vmax.f32 %v364, 0.0
  %v403 = vmax.f32 %v369, 0.0
  %v404 = vmax.f32 %v374, 0.0
  %v405 = vmax.f32 %v379, 0.0
  %v406 = vmax.f32 %v384, 0.0
  %v407 = vmax.f32 %v389, 0.0
  %v408 = vld [vmem:[%s2] sm:$0xf]
  %v409 = vld [vmem:[%s2 + $0x4] sm:$0xf]
  %v410 = vld [vmem:[%s2 + $0x8] sm:$0xf]
  %v411 = vld [vmem:[%s2 + $0xc] sm:$0xf]
  %v412 = vld [vmem:[%s2 + $0x10] sm:$0xf]
  %v413 = vld [vmem:[%s2 + $0x14] sm:$0xf]
  %v414 = vld [vmem:[%s2 + $0x18] sm:$0xf]
  %v415 = vld [vmem:[%s2 + $0x1c] sm:$0xf]
  %v416 = vld [vmem:[%s2 + $0x20] sm:$0xf]
  %v417 = vld [vmem:[%s2 + $0x24] sm:$0xf]
  %v418 = vld [vmem:[%s2 + $0x28] sm:$0xf]
  %v419 = vld [vmem:[%s2 + $0x2c] sm:$0xf]
  %v420 = vld [vmem:[%s2 + $0x30] sm:$0xf]
  %v421 = vld [vmem:[%s2 + $0x34] sm:$0xf]
  %v422 = vld [vmem:[%s2 + $0x38] sm:$0xf]
  %v423 = vld [vmem:[%s2 + $0x3c] sm:$0xf]
  %v424 = vpack.c.bf16 %v393, %v392
  %v425 = vpack.c.bf16 %v395, %v394
  %v426 = vpack.c.bf16 %v397, %v396
  %v427 = vpack.c.bf16 %v399, %v398
  %v428 = vpack.c.bf16 %v401, %v400
  %v429 = vpack.c.bf16 %v403, %v402
  %v430 = vpack.c.bf16 %v405, %v404
  %v431 = vpack.c.bf16 %v407, %v406
  %432 = vset.pattern.permute.xlu0 1
  %433 = vperm.xlu0 %432, %v54
  %v434 = vpop.permute.xlu0 %433
  %436 = vset.pattern.permute.xlu0 1
  %437 = vperm.xlu0 %436, %v55
  %v438 = vpop.permute.xlu0 %437
  %440 = vset.pattern.permute.xlu0 1
  %441 = vperm.xlu0 %440, %v56
  %v442 = vpop.permute.xlu0 %441
  %444 = vset.pattern.permute.xlu0 1
  %445 = vperm.xlu0 %444, %v57
  %v446 = vpop.permute.xlu0 %445
  %448 = vset.pattern.permute.xlu0 1
  %449 = vperm.xlu0 %448, %v58
  %v450 = vpop.permute.xlu0 %449
  %452 = vset.pattern.permute.xlu0 1
  %453 = vperm.xlu0 %452, %v59
  %v454 = vpop.permute.xlu0 %453
  %456 = vset.pattern.permute.xlu0 1
  %457 = vperm.xlu0 %456, %v60
  %v458 = vpop.permute.xlu0 %457
  %460 = vset.pattern.permute.xlu0 1
  %461 = vperm.xlu0 %460, %v61
  %v462 = vpop.permute.xlu0 %461
  %464 = vset.pattern.permute.xlu0 1
  %465 = vperm.xlu0 %464, %v62
  %v466 = vpop.permute.xlu0 %465
  %468 = vset.pattern.permute.xlu0 1
  %469 = vperm.xlu0 %468, %v63
  %v470 = vpop.permute.xlu0 %469
  %472 = vset.pattern.permute.xlu0 1
  %473 = vperm.xlu0 %472, %v64
  %v474 = vpop.permute.xlu0 %473
  %476 = vset.pattern.permute.xlu0 1
  %477 = vperm.xlu0 %476, %v65
  %v478 = vpop.permute.xlu0 %477
  %480 = vset.pattern.permute.xlu0 1
  %481 = vperm.xlu0 %480, %v66
  %v482 = vpop.permute.xlu0 %481
  %484 = vset.pattern.permute.xlu0 1
  %485 = vperm.xlu0 %484, %v67
  %v486 = vpop.permute.xlu0 %485
  %488 = vset.pattern.permute.xlu0 1
  %489 = vperm.xlu0 %488, %v68
  %v490 = vpop.permute.xlu0 %489
  %492 = vset.pattern.permute.xlu0 1
  %493 = vperm.xlu0 %492, %v69
  %v494 = vpop.permute.xlu0 %493
  %v512 = vunpack.c.l.b16 %v408
  %v513 = vunpack.c.l.b16 %v409
  %v514 = vunpack.c.l.b16 %v410
  %v515 = vunpack.c.l.b16 %v411
  %v516 = vunpack.c.l.b16 %v412
  %v517 = vunpack.c.l.b16 %v413
  %v518 = vunpack.c.l.b16 %v414
  %v519 = vunpack.c.l.b16 %v415
  %v520 = vunpack.c.l.b16 %v416
  %v521 = vunpack.c.l.b16 %v417
  %v522 = vunpack.c.l.b16 %v418
  %v523 = vunpack.c.l.b16 %v419
  %v524 = vunpack.c.l.b16 %v420
  %v525 = vunpack.c.l.b16 %v421
  %v526 = vunpack.c.l.b16 %v422
  %v527 = vunpack.c.l.b16 %v423
  %v528 = vpack.c.b16 %v513, %v512
  %v529 = vpack.c.b16 %v515, %v514
  %v530 = vpack.c.b16 %v517, %v516
  %v531 = vpack.c.b16 %v519, %v518
  %v532 = vpack.c.b16 %v521, %v520
  %v533 = vpack.c.b16 %v523, %v522
  %v534 = vpack.c.b16 %v525, %v524
  %v535 = vpack.c.b16 %v527, %v526
  %544 = vmatprep.subr.bf16.mxu0 0
  %545 = vmatpush1.bf16.msra.mxu0 %v431
  %546 = vmatprep.subr.bf16.mxu0 0
  %547 = vmatpush1.bf16.msra.mxu0 %v430
  %548 = vmatprep.subr.bf16.mxu0 0
  %549 = vmatpush1.bf16.msra.mxu0 %v429
  %550 = vmatprep.subr.bf16.mxu0 0
  %551 = vmatpush1.bf16.msra.mxu0 %v428
  %552 = vmatprep.subr.bf16.mxu0 0
  %553 = vmatpush1.bf16.msra.mxu0 %v427
  %554 = vmatprep.subr.bf16.mxu0 0
  %555 = vmatpush1.bf16.msra.mxu0 %v426
  %556 = vmatprep.subr.bf16.mxu0 0
  %557 = vmatpush1.bf16.msra.mxu0 %v425
  %558 = vmatprep.subr.bf16.mxu0 0
  %559 = vmatpush1.bf16.msra.mxu0 %v424
  %560 = vmatprep.subr.bf16.mxu0 0
  %561 = vmatpush2.bf16.msra.mxu0 0
  %562 = vmatprep.subr.bf16.mxu0 0
  %563 = vmatpush2.bf16.msra.mxu0 0
  %564 = vmatprep.subr.bf16.mxu0 0
  %565 = vmatpush2.bf16.msra.mxu0 0
  %566 = vmatprep.subr.bf16.mxu0 0
  %567 = vmatpush2.bf16.msra.mxu0 0
  %568 = vmatprep.subr.bf16.mxu0 0
  %569 = vmatpush2.bf16.msra.mxu0 0
  %570 = vmatprep.subr.bf16.mxu0 0
  %571 = vmatpush2.bf16.msra.mxu0 0
  %572 = vmatprep.subr.bf16.mxu0 0
  %573 = vmatpush2.bf16.msra.mxu0 0
  %574 = vmatprep.subr.bf16.mxu0 0
  %575 = vmatpush2.bf16.msra.mxu0 0
  %576 = vmatprep.mubr.bf16.mxu0 0
  %577 = vmatmul.mubr.bf16.gmra.mxu0 %v528
  %v578 = vpop.f32.mrf.mxu0
  %v579 = vadd.f32 %v434, %v578
  %v580 = vpop.f32.mrf.mxu0
  %v581 = vpop.f32.mrf.mxu0
  %v582 = vadd.f32 %v438, %v581
  %v583 = vpop.f32.mrf.mxu0
  %584 = vmatprep.mubr.bf16.mxu0 0
  %585 = vmatmul.mubr.bf16.gmra.mxu0 %v529
  %v586 = vpop.f32.mrf.mxu0
  %v587 = vadd.f32 %v442, %v586
  %v588 = vpop.f32.mrf.mxu0
  %v589 = vpop.f32.mrf.mxu0
  %v590 = vadd.f32 %v446, %v589
  %v591 = vpop.f32.mrf.mxu0
  %592 = vmatprep.mubr.bf16.mxu0 0
  %593 = vmatmul.mubr.bf16.gmra.mxu0 %v530
  %v594 = vpop.f32.mrf.mxu0
  %v595 = vadd.f32 %v450, %v594
  %v596 = vpop.f32.mrf.mxu0
  %v597 = vpop.f32.mrf.mxu0
  %v598 = vadd.f32 %v454, %v597
  %v599 = vpop.f32.mrf.mxu0
  %600 = vmatprep.mubr.bf16.mxu0 0
  %601 = vmatmul.mubr.bf16.gmra.mxu0 %v531
  %v602 = vpop.f32.mrf.mxu0
  %v603 = vadd.f32 %v458, %v602
  %v604 = vpop.f32.mrf.mxu0
  %v605 = vpop.f32.mrf.mxu0
  %v606 = vadd.f32 %v462, %v605
  %v607 = vpop.f32.mrf.mxu0
  %608 = vmatprep.mubr.bf16.mxu0 0
  %609 = vmatmul.mubr.bf16.gmra.mxu0 %v532
  %v610 = vpop.f32.mrf.mxu0
  %v611 = vadd.f32 %v466, %v610
  %v612 = vpop.f32.mrf.mxu0
  %v613 = vpop.f32.mrf.mxu0
  %v614 = vadd.f32 %v470, %v613
  %v615 = vpop.f32.mrf.mxu0
  %616 = vmatprep.mubr.bf16.mxu0 0
  %617 = vmatmul.mubr.bf16.gmra.mxu0 %v533
  %v618 = vpop.f32.mrf.mxu0
  %v619 = vadd.f32 %v474, %v618
  %v620 = vpop.f32.mrf.mxu0
  %v621 = vpop.f32.mrf.mxu0
  %v622 = vadd.f32 %v478, %v621
  %v623 = vpop.f32.mrf.mxu0
  %624 = vmatprep.mubr.bf16.mxu0 0
  %625 = vmatmul.mubr.bf16.gmra.mxu0 %v534
  %v626 = vpop.f32.mrf.mxu0
  %v627 = vadd.f32 %v482, %v626
  %v628 = vpop.f32.mrf.mxu0
  %v629 = vpop.f32.mrf.mxu0
  %v630 = vadd.f32 %v486, %v629
  %v631 = vpop.f32.mrf.mxu0
  %632 = vmatprep.mubr.bf16.mxu0 0
  %633 = vmatmul.mubr.bf16.gmra.mxu0 %v535
  %v634 = vpop.f32.mrf.mxu0
  %v635 = vadd.f32 %v490, %v634
  %v636 = vpop.f32.mrf.mxu0
  %v637 = vpop.f32.mrf.mxu0
  %v638 = vadd.f32 %v494, %v637
  %v639 = vpop.f32.mrf.mxu0
  %640 = vdwg.mxu0
  %v641 = vmax.f32 %v579, 0.0
  %v642 = vmax.f32 %v582, 0.0
  %v643 = vmax.f32 %v587, 0.0
  %v644 = vmax.f32 %v590, 0.0
  %v645 = vmax.f32 %v595, 0.0
  %v646 = vmax.f32 %v598, 0.0
  %v647 = vmax.f32 %v603, 0.0
  %v648 = vmax.f32 %v606, 0.0
  %v649 = vmax.f32 %v611, 0.0
  %v650 = vmax.f32 %v614, 0.0
  %v651 = vmax.f32 %v619, 0.0
  %v652 = vmax.f32 %v622, 0.0
  %v653 = vmax.f32 %v627, 0.0
  %v654 = vmax.f32 %v630, 0.0
  %v655 = vmax.f32 %v635, 0.0
  %v656 = vmax.f32 %v638, 0.0
  %657 = vset.pattern.permute.xlu0 2
  %658 = vperm.xlu0 %657, %v54
  %v659 = vpop.permute.xlu0 %658
  %661 = vset.pattern.permute.xlu0 2
  %662 = vperm.xlu0 %661, %v55
  %v663 = vpop.permute.xlu0 %662
  %665 = vset.pattern.permute.xlu0 2
  %666 = vperm.xlu0 %665, %v56
  %v667 = vpop.permute.xlu0 %666
  %669 = vset.pattern.permute.xlu0 2
  %670 = vperm.xlu0 %669, %v57
  %v671 = vpop.permute.xlu0 %670
  %673 = vset.pattern.permute.xlu0 2
  %674 = vperm.xlu0 %673, %v58
  %v675 = vpop.permute.xlu0 %674
  %677 = vset.pattern.permute.xlu0 2
  %678 = vperm.xlu0 %677, %v59
  %v679 = vpop.permute.xlu0 %678
  %681 = vset.pattern.permute.xlu0 2
  %682 = vperm.xlu0 %681, %v60
  %v683 = vpop.permute.xlu0 %682
  %685 = vset.pattern.permute.xlu0 2
  %686 = vperm.xlu0 %685, %v61
  %v687 = vpop.permute.xlu0 %686
  %689 = vset.pattern.permute.xlu0 2
  %690 = vperm.xlu0 %689, %v62
  %v691 = vpop.permute.xlu0 %690
  %693 = vset.pattern.permute.xlu0 2
  %694 = vperm.xlu0 %693, %v63
  %v695 = vpop.permute.xlu0 %694
  %697 = vset.pattern.permute.xlu0 2
  %698 = vperm.xlu0 %697, %v64
  %v699 = vpop.permute.xlu0 %698
  %701 = vset.pattern.permute.xlu0 2
  %702 = vperm.xlu0 %701, %v65
  %v703 = vpop.permute.xlu0 %702
  %705 = vset.pattern.permute.xlu0 2
  %706 = vperm.xlu0 %705, %v66
  %v707 = vpop.permute.xlu0 %706
  %709 = vset.pattern.permute.xlu0 2
  %710 = vperm.xlu0 %709, %v67
  %v711 = vpop.permute.xlu0 %710
  %713 = vset.pattern.permute.xlu0 2
  %714 = vperm.xlu0 %713, %v68
  %v715 = vpop.permute.xlu0 %714
  %717 = vset.pattern.permute.xlu0 2
  %718 = vperm.xlu0 %717, %v69
  %v719 = vpop.permute.xlu0 %718
  %v721 = vmul.f32 %v641, %v659
  %v722 = vmul.f32 %v642, %v663
  %v723 = vmul.f32 %v643, %v667
  %v724 = vmul.f32 %v644, %v671
  %v725 = vmul.f32 %v645, %v675
  %v726 = vmul.f32 %v646, %v679
  %v727 = vmul.f32 %v647, %v683
  %v728 = vmul.f32 %v648, %v687
  %v729 = vmul.f32 %v649, %v691
  %v730 = vmul.f32 %v650, %v695
  %v731 = vmul.f32 %v651, %v699
  %v732 = vmul.f32 %v652, %v703
  %v733 = vmul.f32 %v653, %v707
  %v734 = vmul.f32 %v654, %v711
  %v735 = vmul.f32 %v655, %v715
  %v736 = vmul.f32 %v656, %v719
  %v737 = vadd.f32 %v721, %v722
  %v738 = vadd.f32 %v737, %v723
  %v739 = vadd.f32 %v738, %v724
  %v740 = vadd.f32 %v739, %v725
  %v741 = vadd.f32 %v740, %v726
  %v742 = vadd.f32 %v741, %v727
  %v743 = vadd.f32 %v742, %v728
  %v744 = vadd.f32 %v743, %v729
  %v745 = vadd.f32 %v744, %v730
  %v746 = vadd.f32 %v745, %v731
  %v747 = vadd.f32 %v746, %v732
  %v748 = vadd.f32 %v747, %v733
  %v749 = vadd.f32 %v748, %v734
  %v750 = vadd.f32 %v749, %v735
  %v751 = vadd.f32 %v750, %v736
  %v752 = vrot.slane %v751, 4
  %v753 = vadd.f32 %v751, %v752
  %v754 = vrot.slane %v753, 2
  %v755 = vadd.f32 %v753, %v754
  %v756 = vrot.slane %v755, 1
  %v757 = vadd.f32 %v755, %v756
  %s758 = sld [smem:[#allocation2]]
  %v759 = vstv %s758
  %v760 = vadd.f32 %v757, %v759
  %761 = vst [vmem:[%s5] sm:$0x1] %v760
  // Predicated region
  $region22: #{static_regressor_forward.1} parent=0 // pred_check
    _
  $region23: #{static_regressor_forward.1} parent=0 // pred_check_branch
    %763 = sbr.rel (0) target = $region25
  $region24: #{static_regressor_forward.1} parent=0 // pred_region
    _
  $region25: #{static_regressor_forward.1} parent=0 // pred_fallthru
    _
  // Predicated region
  $region26: #{static_regressor_forward.1} parent=0 // pred_check
    _
  $region27: #{static_regressor_forward.1} parent=0 // pred_check_branch
    %765 = sbr.rel (0) target = $region29
  $region28: #{static_regressor_forward.1} parent=0 // pred_region
    _
  $region29: #{static_regressor_forward.1} parent=0 // pred_fallthru
    _

</llo_original>
